<compile_context>
chip_gen: v6e
topology: v6e:2x2x1
jax: 0.10.0
libtpu: 0.0.40
codegen_flags: <defaults>
</compile_context>

<pallas_src>
import jax
import jax.numpy as jnp
from jax import lax
from jax.experimental import pallas as pl
from jax.experimental.pallas import tpu as pltpu


# ---------------------------------------------------------------------------
# Kernels
# ---------------------------------------------------------------------------
def _make_ffn_kernel(grid_j):
    """Build the fused FFN kernel; specialize on the number of I-reduction steps."""

    if grid_j == 1:
        # Whole intermediate dim fits in one slab: no accumulator scratch needed.
        def kernel(x_ref, w1_ref, b1_ref, w2_ref, b2_ref, o_ref):
            x = x_ref[...]
            # h = relu(x @ W1^T + b1): contract E on both operands (MXU).
            h = lax.dot_general(
                x, w1_ref[...],
                dimension_numbers=(((1,), (1,)), ((), ())),
                preferred_element_type=jnp.float32,
            )
            h = jnp.maximum(h + b1_ref[...], 0.0)
            # y = h @ W2^T + b2: contract I on both operands (MXU).
            y = lax.dot_general(
                h.astype(w2_ref.dtype), w2_ref[...],
                dimension_numbers=(((1,), (1,)), ((), ())),
                preferred_element_type=jnp.float32,
            )
            o_ref[...] = (y + b2_ref[...]).astype(o_ref.dtype)

        return kernel, False

    def kernel(x_ref, w1_ref, b1_ref, w2_ref, b2_ref, o_ref, acc_ref):
        # x:   (TM, E)        w1 slab: (TI, E)   b1 slab: (1, TI)
        # acc: (TM, E) f32    w2 slab: (E, TI)   b2:      (1, E)
        j = pl.program_id(1)

        x = x_ref[...]
        h = lax.dot_general(
            x, w1_ref[...],
            dimension_numbers=(((1,), (1,)), ((), ())),
            preferred_element_type=jnp.float32,
        )
        h = jnp.maximum(h + b1_ref[...], 0.0)
        d = lax.dot_general(
            h.astype(w2_ref.dtype), w2_ref[...],
            dimension_numbers=(((1,), (1,)), ((), ())),
            preferred_element_type=jnp.float32,
        )

        @pl.when(j == 0)
        def _():
            acc_ref[...] = d                      # no zero-init + add

        @pl.when(jnp.logical_and(j > 0, j < grid_j - 1))
        def _():
            acc_ref[...] += d

        @pl.when(j == grid_j - 1)
        def _():
            # Fused epilogue: final partial never round-trips through acc_ref.
            o_ref[...] = (acc_ref[...] + d + b2_ref[...]).astype(o_ref.dtype)

    return kernel, True


# ---------------------------------------------------------------------------
# Tile / VMEM planning
# ---------------------------------------------------------------------------
def _round_up(x, m):
    return ((x + m - 1) // m) * m


def _pick_divisor_tile(total, target, aligns):
    """Largest t <= target, aligned to one of `aligns` (tried in order), dividing total."""
    for align in aligns:
        t = (target // align) * align
        while t >= align:
            if total % t == 0:
                return t
            t -= align
    return None


def _tile_footprint_bytes(TM, TI, E, x_bytes, w_bytes, out_bytes, needs_acc):
    f = 2 * TM * E * x_bytes                      # x tile, double-buffered
    f += 2 * TI * E * w_bytes                     # W1 slab, double-buffered
    f += 2 * E * TI * w_bytes                     # W2 slab, double-buffered
    f += 2 * TI * w_bytes + 2 * E * w_bytes       # b1 slab + b2, double-buffered
    f += 2 * TM * E * out_bytes                   # out tile, double-buffered
    if needs_acc:
        f += TM * E * 4                           # f32 accumulator scratch
    f += TM * TI * 4                              # h intermediate (f32 temp)
    return f


def _vmem_capacity_bytes():
    try:
        return int(pltpu.get_tpu_info().vmem_capacity_bytes)
    except Exception:
        return 64 * 1024 * 1024                   # conservative (v7x per-TC)


def _plan_tiles(M, I, E, x_itemsize, w_itemsize, out_itemsize, tm, ti, vmem_budget):
    sublane = {4: 8, 2: 16, 1: 32}.get(x_itemsize, 8)
    tm = max(sublane, (tm // sublane) * sublane)

    # Token tile: keep >= 2 grid steps when M allows so the parallel axis feeds
    # both TensorCores on v7x.
    if _round_up(M, sublane) <= tm:
        if M > sublane:
            TM = _round_up(-(-M // 2), sublane)   # ~half of M, sublane aligned
        else:
            TM = _round_up(M, sublane)
    else:
        TM = tm

    # Intermediate tile: prefer 256 alignment (v6e/v7x MXU), then 128; pad I
    # rather than falling back to a huge full-extent block.
    if I <= ti:
        TI = I
    else:
        TI = _pick_divisor_tile(I, ti, (256, 128))
        if TI is None:
            TI = max(128, (ti // 128) * 128)

    # Shrink until the double-buffered footprint fits the VMEM budget.
    while True:
        needs_acc = _round_up(I, TI) > TI
        if _tile_footprint_bytes(TM, TI, E, x_itemsize, w_itemsize,
                                 out_itemsize, needs_acc) <= vmem_budget:
            break
        if TI > 128:
            TI = max(128, ((TI // 2) // 128) * 128)   # keep a 128 multiple
        elif TM > sublane:
            TM = max(sublane, TM // 2)
        else:
            break                                      # as small as we can go

    Mpad = _round_up(M, TM)
    Ipad = _round_up(I, TI)
    return TM, TI, Mpad, Ipad


# ---------------------------------------------------------------------------
# Wrapper
# ---------------------------------------------------------------------------
def feed_forward_network(x, w1, b1, w2, b2, *, tm=512, ti=512):
    """Fused relu(x @ w1.T + b1) @ w2.T + b2.

    x: (..., E);  w1: (I, E), b1: (I,), w2: (E, I), b2: (E,).
    """
    orig_shape = x.shape
    I, E = w1.shape
    x2d = x.reshape(-1, E)
    M = x2d.shape[0]

    x_itemsize = jnp.dtype(x2d.dtype).itemsize
    w_itemsize = jnp.dtype(w1.dtype).itemsize
    out_itemsize = x_itemsize

    vmem_cap = _vmem_capacity_bytes()
    headroom = 8 * 1024 * 1024
    vmem_budget = max(vmem_cap - headroom, 16 * 1024 * 1024)

    TM, TI, Mpad, Ipad = _plan_tiles(M, I, E, x_itemsize, w_itemsize,
                                     out_itemsize, tm, ti, vmem_budget)
    grid_i, grid_j = Mpad // TM, Ipad // TI

    # Pad token / intermediate dims (zero rows contribute 0 through relu+matmul;
    # padded token rows are sliced off below).
    if Mpad > M:
        x2d = jnp.pad(x2d, ((0, Mpad - M), (0, 0)))
    if Ipad > I:
        w1 = jnp.pad(w1, ((0, Ipad - I), (0, 0)))
        b1 = jnp.pad(b1, ((0, Ipad - I),))
        w2 = jnp.pad(w2, ((0, 0), (0, Ipad - I)))

    b1r = b1.reshape(1, Ipad)
    b2r = b2.reshape(1, E)

    kernel, needs_acc = _make_ffn_kernel(grid_j)
    scratch = [pltpu.VMEM((TM, E), jnp.float32)] if needs_acc else []

    footprint = _tile_footprint_bytes(TM, TI, E, x_itemsize, w_itemsize,
                                      out_itemsize, needs_acc)
    vmem_limit = int(min(vmem_cap - 1 * 1024 * 1024,
                         footprint + 16 * 1024 * 1024))

    # Weights (and b1) are re-streamed once per token tile.
    weight_stream_bytes = (w1.size + b1r.size) * w_itemsize + w2.size * w_itemsize
    cost = pl.CostEstimate(
        flops=4 * Mpad * Ipad * E,                # two (M,I,E) matmuls, 2 flops/MAC
        transcendentals=0,
        bytes_accessed=(
            x2d.size * x_itemsize
            + grid_i * weight_stream_bytes
            + b2r.size * w_itemsize
            + Mpad * E * out_itemsize
        ),
    )

    out = pl.pallas_call(
        kernel,
        out_shape=jax.ShapeDtypeStruct((Mpad, E), x.dtype),
        grid_spec=pltpu.PrefetchScalarGridSpec(
            num_scalar_prefetch=0,
            grid=(grid_i, grid_j),
            in_specs=[
                # x tile: changes with i, invariant over the I-reduction axis.
                pl.BlockSpec((TM, E), lambda i, j: (i, 0)),
                # W1 slab (rows TI of (I, E)): changes with j only.
                pl.BlockSpec((TI, E), lambda i, j: (j, 0)),
                # b1 slab: changes with j only.
                pl.BlockSpec((1, TI), lambda i, j: (0, j)),
                # W2 slab (cols TI of (E, I)): changes with j only.
                pl.BlockSpec((E, TI), lambda i, j: (0, j)),
                # b2: fully resident.
                pl.BlockSpec((1, E), lambda i, j: (0, 0)),
            ],
            out_specs=pl.BlockSpec((TM, E), lambda i, j: (i, 0)),
            scratch_shapes=scratch,
        ),
        compiler_params=pltpu.CompilerParams(
            dimension_semantics=("parallel", "arbitrary"),
            vmem_limit_bytes=vmem_limit,
        ),
        cost_estimate=cost,
    )(x2d, w1, b1r, w2, b2r)

    return out[:M].reshape(orig_shape)


def init_ffn_params(key, embedding_dim, intermediate_dim, dtype=jnp.float32):
    """Deterministic init mimicking nn.Linear: U(-1/sqrt(fan_in), 1/sqrt(fan_in))."""
    k1, k2, k3, k4 = jax.random.split(key, 4)
    bound1 = 1.0 / (embedding_dim ** 0.5)
    bound2 = 1.0 / (intermediate_dim ** 0.5)
    w1 = jax.random.uniform(k1, (intermediate_dim, embedding_dim),
                            dtype, minval=-bound1, maxval=bound1)
    b1 = jax.random.uniform(k2, (intermediate_dim,),
                            dtype, minval=-bound1, maxval=bound1)
    w2 = jax.random.uniform(k3, (embedding_dim, intermediate_dim),
                            dtype, minval=-bound2, maxval=bound2)
    b2 = jax.random.uniform(k4, (embedding_dim,),
                            dtype, minval=-bound2, maxval=bound2)
    return w1, b1, w2, b2


if __name__ == "__main__":
    key = jax.random.PRNGKey(0)
    kx, kp = jax.random.split(key)

    # Test 1: small shapes, single intermediate slab (grid_j == 1 fast path).
    batch, seq, embedding_dim, intermediate_dim = 2, 8, 32, 64
    x = jax.random.normal(kx, (batch, seq, embedding_dim), jnp.float32)
    w1, b1, w2, b2 = init_ffn_params(kp, embedding_dim, intermediate_dim)
    y = jax.block_until_ready(feed_forward_network(x, w1, b1, w2, b2))
    ref = jnp.maximum(x @ w1.T + b1, 0.0) @ w2.T + b2
    assert y.shape == x.shape
    assert jnp.allclose(y, ref, atol=1e-5, rtol=1e-5)

    # Test 2: force the multi-slab reduction path (grid_j > 1, f32 accumulator).
    intermediate_dim2 = 256
    w1b, b1b, w2b, b2b = init_ffn_params(kp, embedding_dim, intermediate_dim2)
    y2 = jax.block_until_ready(
        feed_forward_network(x, w1b, b1b, w2b, b2b, tm=8, ti=128))
    ref2 = jnp.maximum(x @ w1b.T + b1b, 0.0) @ w2b.T + b2b
    assert y2.shape == x.shape
    assert jnp.allclose(y2, ref2, atol=1e-4, rtol=1e-4)

    print("KERNEL_OK")
</pallas_src>

<mosaic_0001>
module attributes {stable_mosaic.version = 11 : i64} {
  func.func @kernel(%arg0: i32, %arg1: i32, %arg2: memref<8x32xf32, #tpu.memory_space<vmem>>, %arg3: memref<64x32xf32, #tpu.memory_space<vmem>>, %arg4: memref<1x64xf32, #tpu.memory_space<vmem>>, %arg5: memref<32x64xf32, #tpu.memory_space<vmem>>, %arg6: memref<1x32xf32, #tpu.memory_space<vmem>>, %arg7: memref<8x32xf32, #tpu.memory_space<vmem>>) attributes {dimension_semantics = [#tpu.dimension_semantics<parallel>, #tpu.dimension_semantics<arbitrary>], iteration_bounds = array<i64: 2, 1>, scalar_prefetch = 0 : i64, scratch_operands = 0 : i64, tpu.core_type = #tpu.core_type<tc>, window_params = [{transform_indices = @transform_0, window_bounds = array<i64: 8, 32>}, {transform_indices = @transform_1, window_bounds = array<i64: 64, 32>}, {transform_indices = @transform_2, window_bounds = array<i64: 1, 64>}, {transform_indices = @transform_3, window_bounds = array<i64: 32, 64>}, {pipeline_mode = #tpu.pipeline_mode<synchronous>, transform_indices = @transform_4, window_bounds = array<i64: 1, 32>}, {transform_indices = @transform_5, window_bounds = array<i64: 8, 32>}]} {
    %c0 = arith.constant 0 : index
    %c0_0 = arith.constant 0 : index
    %0 = vector.load %arg2[%c0, %c0_0] : memref<8x32xf32, #tpu.memory_space<vmem>>, vector<8x32xf32>
    %c0_1 = arith.constant 0 : index
    %c0_2 = arith.constant 0 : index
    %1 = vector.load %arg3[%c0_1, %c0_2] : memref<64x32xf32, #tpu.memory_space<vmem>>, vector<64x32xf32>
    %cst = arith.constant dense<0.000000e+00> : vector<8x64xf32>
    %2 = tpu.matmul %0, %1, %cst {dimension_numbers = #tpu.dot_dimension_numbers<[1], [1], [0], [0], [0, 0, 1, 0], [], []>} : vector<8x32xf32>, vector<64x32xf32>, vector<8x64xf32> -> vector<8x64xf32>
    %c0_3 = arith.constant 0 : index
    %c0_4 = arith.constant 0 : index
    %3 = vector.load %arg4[%c0_3, %c0_4] : memref<1x64xf32, #tpu.memory_space<vmem>>, vector<1x64xf32>
    %4 = vector.broadcast %3 : vector<1x64xf32> to vector<8x64xf32>
    %5 = arith.addf %2, %4 : vector<8x64xf32>
    %cst_5 = arith.constant 0.000000e+00 : f32
    %6 = vector.broadcast %cst_5 : f32 to vector<8x64xf32>
    %7 = arith.maximumf %5, %6 : vector<8x64xf32>
    %c0_6 = arith.constant 0 : index
    %c0_7 = arith.constant 0 : index
    %8 = vector.load %arg5[%c0_6, %c0_7] : memref<32x64xf32, #tpu.memory_space<vmem>>, vector<32x64xf32>
    %cst_8 = arith.constant dense<0.000000e+00> : vector<8x32xf32>
    %9 = tpu.matmul %7, %8, %cst_8 {dimension_numbers = #tpu.dot_dimension_numbers<[1], [1], [0], [0], [0, 0, 1, 0], [], []>} : vector<8x64xf32>, vector<32x64xf32>, vector<8x32xf32> -> vector<8x32xf32>
    %c0_9 = arith.constant 0 : index
    %c0_10 = arith.constant 0 : index
    %10 = vector.load %arg6[%c0_9, %c0_10] : memref<1x32xf32, #tpu.memory_space<vmem>>, vector<1x32xf32>
    %11 = vector.broadcast %10 : vector<1x32xf32> to vector<8x32xf32>
    %12 = arith.addf %9, %11 : vector<8x32xf32>
    %c0_11 = arith.constant 0 : index
    %c0_12 = arith.constant 0 : index
    %13 = vector.load %arg7[%c0_11, %c0_12] : memref<8x32xf32, #tpu.memory_space<vmem>>, vector<8x32xf32>
    tpu.vector_store %arg7[%c0_11, %c0_12], %12 {strides = array<i32>} : memref<8x32xf32, #tpu.memory_space<vmem>>, vector<8x32xf32>,
    return
  }
  func.func @transform_0(%arg0: i32, %arg1: i32) -> (i32, i32) {
    %c0_i32 = arith.constant 0 : i32
    %c0_i32_0 = arith.constant 0 : i32
    return %arg0, %c0_i32 : i32, i32
  }
  func.func @transform_1(%arg0: i32, %arg1: i32) -> (i32, i32) {
    %c0_i32 = arith.constant 0 : i32
    %c0_i32_0 = arith.constant 0 : i32
    return %arg1, %c0_i32 : i32, i32
  }
  func.func @transform_2(%arg0: i32, %arg1: i32) -> (i32, i32) {
    %c0_i32 = arith.constant 0 : i32
    %c0_i32_0 = arith.constant 0 : i32
    return %c0_i32, %arg1 : i32, i32
  }
  func.func @transform_3(%arg0: i32, %arg1: i32) -> (i32, i32) {
    %c0_i32 = arith.constant 0 : i32
    %c0_i32_0 = arith.constant 0 : i32
    return %c0_i32, %arg1 : i32, i32
  }
  func.func @transform_4(%arg0: i32, %arg1: i32) -> (i32, i32) {
    %c0_i32 = arith.constant 0 : i32
    %c0_i32_0 = arith.constant 0 : i32
    %c0_i32_1 = arith.constant 0 : i32
    return %c0_i32, %c0_i32_0 : i32, i32
  }
  func.func @transform_5(%arg0: i32, %arg1: i32) -> (i32, i32) {
    %c0_i32 = arith.constant 0 : i32
    %c0_i32_0 = arith.constant 0 : i32
    return %arg0, %c0_i32 : i32, i32
  }
}

</mosaic_0001>

<llo_original>
// kernel: tpu_custom_call.1
$region0: #{tpu_custom_call.1}
  #allocation0 [shape = 'u32[]', space=smem, size = 0x4, offset = 0x4, fixed_abs, tag = 'smem constant byte address 0x4 - core index']
  #allocation1 [shape = 'u32[144,128]{1,0:T(1,128)}', space=vmem, size = 0x12000, scoped, tag = 'internal scratch']
  %s0 = inlined_call_operand.vmem [shape: f32[16,32], index: 0, kind: input, shape index: {}]
  %s1 = inlined_call_operand.vmem [shape: f32[64,32], index: 1, kind: input, shape index: {}]
  %s2 = inlined_call_operand.vmem [shape: f32[1,64], index: 2, kind: input, shape index: {}]
  %s3 = inlined_call_operand.vmem [shape: f32[32,64], index: 3, kind: input, shape index: {}]
  %s4 = inlined_call_operand.vmem [shape: f32[1,32], index: 4, kind: input, shape index: {}]
  %s5 = inlined_call_operand.hbm [shape: f32[16,32], index: 5, kind: output, shape index: {}]
  %s6 = sld [smem:[#allocation0]]
  $region53: #{tpu_custom_call.1} parent=0
    _
  %s8 = ssub.s32 1, %s6
  %s9 = scalar_select 0, %s8, %s6
  $region1: #{tpu_custom_call.1} parent=0
    #allocation2 [shape = 'u8[8192]{0}', space=vmem, size = 0x2000, scoped, tag = 'output window, operand 0']
    #allocation3 [shape = 's32[2]{0}', space=sflag, size = 0x8, scoped, tag = 'scoped memory for tpu_custom_call.1']
    %10 = vsyncpa [#allocation3], 0
    %s11 = scalar_lea.sflag [#allocation3], 1
    %12 = vsyncpa %s11, 0
    loop: start=0, step=1, limit=4
    $region2: #{tpu_custom_call.1} parent=1 // loop_pre_header
      _
    $region3: #{tpu_custom_call.1} parent=1 // loop_header
      %s14 = sphi 0, %s18
      %p15 = scmp.ge.s32.totalorder %s14, 4
      %s21 = sphi 0, %s33
      %s22 = sphi 0, %s29
      %s23 = sphi 0, %s21
      %s24 = sphi 0, %s22
      %s25 = sphi 0, %s23
      %s26 = sphi 0, %s24
      %s36 = sphi 0, %s38
      %s39 = sphi 0, %s36
      %s40 = sphi 0, %s39
      %s56 = sphi 0, %s40
      %s62 = sphi 0, %s64
      %s65 = sphi 0, %s62
      %s66 = sphi 0, %s65
      %s82 = sphi 0, %s66
      %s88 = sphi 0, %s90
      %s91 = sphi 0, %s88
      %s92 = sphi 0, %s91
      %s108 = sphi 0, %s92
      %s114 = sphi 0, %s116
      %s117 = sphi 0, %s114
      %s118 = sphi 0, %s117
      %s134 = sphi 0, %s118
      %s138 = sphi 0, %s138
      %s140 = sphi 0, %s138
      %s141 = sphi 0, %s140
      %s155 = sphi 0, %s141
      %s161 = sphi 0, %s163
      %s164 = sphi 0, %s161
      %s165 = sphi 0, %s164
      %s181 = sphi 0, %s165
    $region4: #{tpu_custom_call.1} parent=1 // loop_header_branch
      %17 = sbr.rel (%p15) target = $region8
    $region5: #{tpu_custom_call.1} parent=1 // loop_body
      %s19 = ssub.s32 %s14, 1
      %s20 = ssub.s32 %s14, 2
      %s27 = sadd.s32 1, %s22
      %p28 = scmp.ge.s32.totalorder %s27, 1
      %s29 = scalar_select %p28, 0, %s27
      %s30 = sadd.s32 1, %s21
      %s31 = scalar_select %p28, %s30, %s21
      %p32 = scmp.ge.s32.totalorder %s31, 2
      %s33 = scalar_select %p32, 0, %s31
      %s34 = ssub.s32 %s21, %s33
      %p35 = scmp.eq.s32.totalorder %s34, 0
      %s37 = sadd.s32 %s36, 1
      %s38 = scalar_select %p35, %s36, %s37
      %p41 = pneg %p35
      %p42 = scmp.eq.s32.totalorder %s14, 1
      %p43 = por %p41, %p42
      %p44 = scmp.ne.s32.totalorder %s36, %s39
      %p45 = scmp.eq.s32.totalorder %s14, 0
      %p46 = por %p44, %p45
      %p47 = scmp.ne.s32.totalorder %s36, %s39
      %p48 = scmp.eq.s32.totalorder %s19, 1
      %p49 = por %p47, %p48
      %p50 = scmp.ne.s32.totalorder %s39, %s40
      %p51 = scmp.eq.s32.totalorder %s19, 0
      %p52 = por %p50, %p51
      %p53 = scmp.ne.s32.totalorder %s39, %s40
      %p54 = scmp.eq.s32.totalorder %s20, 1
      %p55 = por %p53, %p54
      %p57 = scmp.ne.s32.totalorder %s40, %s56
      %p58 = scmp.eq.s32.totalorder %s20, 0
      %p59 = por %p57, %p58
      %s60 = ssub.s32 %s22, %s29
      %p61 = scmp.eq.s32.totalorder %s60, 0
      %s63 = sadd.s32 %s62, 1
      %s64 = scalar_select %p61, %s62, %s63
      %p67 = pneg %p61
      %p68 = scmp.eq.s32.totalorder %s14, 1
      %p69 = por %p67, %p68
      %p70 = scmp.ne.s32.totalorder %s62, %s65
      %p71 = scmp.eq.s32.totalorder %s14, 0
      %p72 = por %p70, %p71
      %p73 = scmp.ne.s32.totalorder %s62, %s65
      %p74 = scmp.eq.s32.totalorder %s19, 1
      %p75 = por %p73, %p74
      %p76 = scmp.ne.s32.totalorder %s65, %s66
      %p77 = scmp.eq.s32.totalorder %s19, 0
      %p78 = por %p76, %p77
      %p79 = scmp.ne.s32.totalorder %s65, %s66
      %p80 = scmp.eq.s32.totalorder %s20, 1
      %p81 = por %p79, %p80
      %p83 = scmp.ne.s32.totalorder %s66, %s82
      %p84 = scmp.eq.s32.totalorder %s20, 0
      %p85 = por %p83, %p84
      %s86 = ssub.s32 %s22, %s29
      %p87 = scmp.eq.s32.totalorder %s86, 0
      %s89 = sadd.s32 %s88, 1
      %s90 = scalar_select %p87, %s88, %s89
      %p93 = pneg %p87
      %p94 = scmp.eq.s32.totalorder %s14, 1
      %p95 = por %p93, %p94
      %p96 = scmp.ne.s32.totalorder %s88, %s91
      %p97 = scmp.eq.s32.totalorder %s14, 0
      %p98 = por %p96, %p97
      %p99 = scmp.ne.s32.totalorder %s88, %s91
      %p100 = scmp.eq.s32.totalorder %s19, 1
      %p101 = por %p99, %p100
      %p102 = scmp.ne.s32.totalorder %s91, %s92
      %p103 = scmp.eq.s32.totalorder %s19, 0
      %p104 = por %p102, %p103
      %p105 = scmp.ne.s32.totalorder %s91, %s92
      %p106 = scmp.eq.s32.totalorder %s20, 1
      %p107 = por %p105, %p106
      %p109 = scmp.ne.s32.totalorder %s92, %s108
      %p110 = scmp.eq.s32.totalorder %s20, 0
      %p111 = por %p109, %p110
      %s112 = ssub.s32 %s22, %s29
      %p113 = scmp.eq.s32.totalorder %s112, 0
      %s115 = sadd.s32 %s114, 1
      %s116 = scalar_select %p113, %s114, %s115
      %p119 = pneg %p113
      %p120 = scmp.eq.s32.totalorder %s14, 1
      %p121 = por %p119, %p120
      %p122 = scmp.ne.s32.totalorder %s114, %s117
      %p123 = scmp.eq.s32.totalorder %s14, 0
      %p124 = por %p122, %p123
      %p125 = scmp.ne.s32.totalorder %s114, %s117
      %p126 = scmp.eq.s32.totalorder %s19, 1
      %p127 = por %p125, %p126
      %p128 = scmp.ne.s32.totalorder %s117, %s118
      %p129 = scmp.eq.s32.totalorder %s19, 0
      %p130 = por %p128, %p129
      %p131 = scmp.ne.s32.totalorder %s117, %s118
      %p132 = scmp.eq.s32.totalorder %s20, 1
      %p133 = por %p131, %p132
      %p135 = scmp.ne.s32.totalorder %s118, %s134
      %p136 = scmp.eq.s32.totalorder %s20, 0
      %p137 = por %p135, %p136
      %s139 = sadd.s32 %s138, 1
      %p142 = scmp.eq.s32.totalorder %s14, 1
      %p143 = scmp.ne.s32.totalorder %s138, %s140
      %p144 = scmp.eq.s32.totalorder %s14, 0
      %p145 = por %p143, %p144
      %p146 = scmp.ne.s32.totalorder %s138, %s140
      %p147 = scmp.eq.s32.totalorder %s19, 1
      %p148 = por %p146, %p147
      %p149 = scmp.ne.s32.totalorder %s140, %s141
      %p150 = scmp.eq.s32.totalorder %s19, 0
      %p151 = por %p149, %p150
      %p152 = scmp.ne.s32.totalorder %s140, %s141
      %p153 = scmp.eq.s32.totalorder %s20, 1
      %p154 = por %p152, %p153
      %p156 = scmp.ne.s32.totalorder %s141, %s155
      %p157 = scmp.eq.s32.totalorder %s20, 0
      %p158 = por %p156, %p157
      %s159 = ssub.s32 %s21, %s33
      %p160 = scmp.eq.s32.totalorder %s159, 0
      %s162 = sadd.s32 %s161, 1
      %s163 = scalar_select %p160, %s161, %s162
      %p166 = pneg %p160
      %p167 = scmp.eq.s32.totalorder %s14, 1
      %p168 = por %p166, %p167
      %p169 = scmp.ne.s32.totalorder %s161, %s164
      %p170 = scmp.eq.s32.totalorder %s14, 0
      %p171 = por %p169, %p170
      %p172 = scmp.ne.s32.totalorder %s161, %s164
      %p173 = scmp.eq.s32.totalorder %s19, 1
      %p174 = por %p172, %p173
      %p175 = scmp.ne.s32.totalorder %s164, %s165
      %p176 = scmp.eq.s32.totalorder %s19, 0
      %p177 = por %p175, %p176
      %p178 = scmp.ne.s32.totalorder %s164, %s165
      %p179 = scmp.eq.s32.totalorder %s20, 1
      %p180 = por %p178, %p179
      %p182 = scmp.ne.s32.totalorder %s165, %s181
      %p183 = scmp.eq.s32.totalorder %s20, 0
      %p184 = por %p182, %p183
      %p185 = scmp.le.s32.totalorder 1, %s14
      %p186 = scmp.lt.s32.totalorder %s14, 3
      %p187 = pnand %p185, %p186
      %p188 = pneg %p187
      // Predicated region
      $region9: #{tpu_custom_call.1} parent=5 // pred_check
        _
      $region10: #{tpu_custom_call.1} parent=5 // pred_check_branch
        %190 = sbr.rel (%p187) target = $region12
      $region11: #{tpu_custom_call.1} parent=5 // pred_region
        %s191 = ssub.s32 %s14, 1
        // Predicated region
        $region13: #{tpu_custom_call.1} parent=11 // pred_check
          %p192 = pneg %p78
        $region14: #{tpu_custom_call.1} parent=11 // pred_check_branch
          %194 = sbr.rel (%p192) target = $region16
        $region15: #{tpu_custom_call.1} parent=11 // pred_region
          %s195 = smul.u32 8, %s24
          %p196 = scmp.lt.s32.totalorder %s195, 7
          %s197 = scalar_select %p196, %s195, 7
          %s198 = smul.addr %s197, 8
          %s199 = scalar_lea.vmem %s1, %s198
          %s200 = smul.u32 8, %s24
        $region16: #{tpu_custom_call.1} parent=11 // pred_fallthru
          _
        // Predicated region
        $region17: #{tpu_custom_call.1} parent=11 // pred_check
          %p201 = pneg %p104
        $region18: #{tpu_custom_call.1} parent=11 // pred_check_branch
          %203 = sbr.rel (%p201) target = $region20
        $region19: #{tpu_custom_call.1} parent=11 // pred_region
          %p204 = scmp.lt.s32.totalorder %s24, 0
          %s205 = scalar_select %p204, %s24, 0
          %s206 = scalar_lea.vmem %s2, %s205
        $region20: #{tpu_custom_call.1} parent=11 // pred_fallthru
          _
        // Predicated region
        $region21: #{tpu_custom_call.1} parent=11 // pred_check
          %p207 = pneg %p130
        $region22: #{tpu_custom_call.1} parent=11 // pred_check_branch
          %209 = sbr.rel (%p207) target = $region24
        $region23: #{tpu_custom_call.1} parent=11 // pred_region
          %p210 = scmp.lt.s32.totalorder %s24, 0
          %s211 = scalar_select %p210, %s24, 0
          %s212 = smul.addr %s211, 8
          %s213 = scalar_lea.vmem %s3, %s212
        $region24: #{tpu_custom_call.1} parent=11 // pred_fallthru
          _
        // Predicated region
        $region25: #{tpu_custom_call.1} parent=11 // pred_check
          %p214 = pneg %p151
        $region26: #{tpu_custom_call.1} parent=11 // pred_check_branch
          %216 = sbr.rel (%p214) target = $region28
        $region27: #{tpu_custom_call.1} parent=11 // pred_region
          _
        $region28: #{tpu_custom_call.1} parent=11 // pred_fallthru
          _
      $region12: #{tpu_custom_call.1} parent=5 // pred_fallthru
        _
      %p217 = scmp.lt.s32.totalorder %s14, 2
      // Predicated region
      $region29: #{tpu_custom_call.1} parent=5 // pred_check
        %p218 = pneg %p217
      $region30: #{tpu_custom_call.1} parent=5 // pred_check_branch
        %220 = sbr.rel (%p218) target = $region32
      $region31: #{tpu_custom_call.1} parent=5 // pred_region
        // Predicated region
        $region33: #{tpu_custom_call.1} parent=31 // pred_check
          %p221 = pneg %p46
        $region34: #{tpu_custom_call.1} parent=31 // pred_check_branch
          %223 = sbr.rel (%p221) target = $region36
        $region35: #{tpu_custom_call.1} parent=31 // pred_region
          %p224 = scmp.lt.s32.totalorder %s21, 1
          %s225 = scalar_select %p224, %s21, 1
          %s226 = smul.addr %s225, 8
          %s227 = scalar_lea.vmem %s0, %s226
        $region36: #{tpu_custom_call.1} parent=31 // pred_fallthru
          _
      $region32: #{tpu_custom_call.1} parent=5 // pred_fallthru
        _
      %p228 = scmp.le.s32.totalorder 1, %s14
      %p229 = scmp.lt.s32.totalorder %s14, 3
      %p230 = pnand %p228, %p229
      %p231 = pneg %p230
      // Predicated region
      $region37: #{tpu_custom_call.1} parent=5 // pred_check
        _
      $region38: #{tpu_custom_call.1} parent=5 // pred_check_branch
        %233 = sbr.rel (%p230) target = $region40
      $region39: #{tpu_custom_call.1} parent=5 // pred_region
        %s234 = ssub.s32 %s14, 1
        %p235 = scmp.lt.s32.totalorder %s23, 1
        %s236 = scalar_select %p235, %s23, 1
        %s237 = smul.addr %s236, 8
        %s238 = scalar_lea.vmem %s0, %s237
        %p239 = pneg %p52
        %p240 = pneg %p49
        %s241 = smul.u32 8, %s24
        %p242 = scmp.lt.s32.totalorder %s241, 7
        %s243 = scalar_select %p242, %s241, 7
        %s244 = smul.addr %s243, 8
        %s245 = scalar_lea.vmem %s1, %s244
        %p246 = pneg %p78
        %p247 = pneg %p75
        %p248 = scmp.lt.s32.totalorder %s24, 0
        %s249 = scalar_select %p248, %s24, 0
        %s250 = scalar_lea.vmem %s2, %s249
        %p251 = pneg %p104
        %p252 = pneg %p101
        %p253 = scmp.lt.s32.totalorder %s24, 0
        %s254 = scalar_select %p253, %s24, 0
        %s255 = smul.addr %s254, 8
        %s256 = scalar_lea.vmem %s3, %s255
        %p257 = pneg %p130
        %p258 = pneg %p127
        %p259 = pneg %p151
        %p260 = pneg %p148
        %p261 = pneg %p177
        %p262 = pneg %p174
        %s263 = sand.u32 %s164, 1
        %s264 = scalar_lea.sflag [#allocation3], %s263
        %s265 = sand.u32 %s164, 1
        %s266 = smul.addr %s265, 8
        %s267 = scalar_lea.vmem [#allocation2], %s266
        %p268 = scmp.lt.s32.totalorder %s23, 1
        %s269 = scalar_select %p268, %s23, 1
        %s270 = smul.addr %s269, 8
        %s271 = scalar_lea.vmem %s0, %s270
        %s272 = smul.u32 8, %s24
        %p273 = scmp.lt.s32.totalorder %s272, 7
        %s274 = scalar_select %p273, %s272, 7
        %s275 = smul.addr %s274, 8
        %s276 = scalar_lea.vmem %s1, %s275
        %s277 = smul.u32 8, %s24
        %p278 = scmp.lt.s32.totalorder %s24, 0
        %s279 = scalar_select %p278, %s24, 0
        %s280 = scalar_lea.vmem %s2, %s279
        %p281 = scmp.lt.s32.totalorder %s24, 0
        %s282 = scalar_select %p281, %s24, 0
        %s283 = smul.addr %s282, 8
        %s284 = scalar_lea.vmem %s3, %s283
        %v285 = vld [vmem:[%s271] sm:$0xff]
        %v286 = vld [vmem:[%s276] sm:$0xff]
        %v287 = vld [vmem:[%s276 + $0x8] sm:$0xff]
        %v288 = vld [vmem:[%s276 + $0x10] sm:$0xff]
        %v289 = vld [vmem:[%s276 + $0x18] sm:$0xff]
        %v290 = vld [vmem:[%s276 + $0x20] sm:$0xff]
        %v291 = vld [vmem:[%s276 + $0x28] sm:$0xff]
        %v292 = vld [vmem:[%s276 + $0x30] sm:$0xff]
        %v293 = vld [vmem:[%s276 + $0x38] sm:$0xff]
        %v294 = vld [vmem:[%s280] sm:$0x1]
        %v296 = vlaneseq
        %v297 = vshrl.u32 %v296, 7
        %v298 = vsub.s32 0, %v297
        %v299 = vrot.slane %v294, %v298
        %vm301 = vcmask 261120
        %v303 = vsel %vm301, %v285, 0
        %v306 = vsel %vm301, %v286, 0
        %v309 = vsel %vm301, %v287, 0
        %v312 = vsel %vm301, %v288, 0
        %v315 = vsel %vm301, %v289, 0
        %v318 = vsel %vm301, %v290, 0
        %v321 = vsel %vm301, %v291, 0
        %v324 = vsel %vm301, %v292, 0
        %v327 = vsel %vm301, %v293, 0
        %329 = vmatprep.subr.mxu0 0.0
        %330 = vmatpush1.xpose.msra.mxu0 0.0
        %331 = vmatprep.subr.mxu0 0.0
        %332 = vmatpush1.xpose.msra.mxu0 0.0
        %333 = vmatprep.subr.mxu0 0.0
        %334 = vmatpush1.xpose.msra.mxu0 0.0
        %335 = vmatprep.subr.mxu0 0.0
        %336 = vmatpush1.xpose.msra.mxu0 0.0
        %337 = vmatprep.subr.mxu0 0.0
        %338 = vmatpush1.xpose.msra.mxu0 0.0
        %339 = vmatprep.subr.mxu0 0.0
        %340 = vmatpush1.xpose.msra.mxu0 0.0
        %341 = vmatprep.subr.mxu0 0.0
        %342 = vmatpush1.xpose.msra.mxu0 0.0
        %343 = vmatprep.subr.mxu0 0.0
        %344 = vmatpush1.xpose.msra.mxu0 0.0
        %345 = vmatprep.subr.mxu0 0.0
        %346 = vmatpush1.xpose.msra.mxu0 %v327
        %347 = vmatprep.subr.mxu0 0.0
        %348 = vmatpush1.xpose.msra.mxu0 %v324
        %349 = vmatprep.subr.mxu0 0.0
        %350 = vmatpush1.xpose.msra.mxu0 %v321
        %351 = vmatprep.subr.mxu0 0.0
        %352 = vmatpush1.xpose.msra.mxu0 %v318
        %353 = vmatprep.subr.mxu0 0.0
        %354 = vmatpush1.xpose.msra.mxu0 %v315
        %355 = vmatprep.subr.mxu0 0.0
        %356 = vmatpush1.xpose.msra.mxu0 %v312
        %357 = vmatprep.subr.mxu0 0.0
        %358 = vmatpush1.xpose.msra.mxu0 %v309
        %359 = vmatprep.subr.mxu0 0.0
        %360 = vmatpush1.xpose.msra.mxu0 %v306
        %361 = vmatprep.subr.mxu0 0.0
        %362 = vmatpush2.xpose.msra.mxu0 0.0
        %363 = vmatprep.subr.mxu0 0.0
        %364 = vmatpush2.xpose.msra.mxu0 0.0
        %365 = vmatprep.subr.mxu0 0.0
        %366 = vmatpush2.xpose.msra.mxu0 0.0
        %367 = vmatprep.subr.mxu0 0.0
        %368 = vmatpush2.xpose.msra.mxu0 0.0
        %369 = vmatprep.subr.mxu0 0.0
        %370 = vmatpush2.xpose.msra.mxu0 0.0
        %371 = vmatprep.subr.mxu0 0.0
        %372 = vmatpush2.xpose.msra.mxu0 0.0
        %373 = vmatprep.subr.mxu0 0.0
        %374 = vmatpush2.xpose.msra.mxu0 0.0
        %375 = vmatprep.subr.mxu0 0.0
        %376 = vmatpush2.xpose.msra.mxu0 0.0
        %377 = vmatprep.subr.mxu0 0.0
        %378 = vmatpush2.xpose.msra.mxu0 0.0
        %379 = vmatprep.subr.mxu0 0.0
        %380 = vmatpush2.xpose.msra.mxu0 0.0
        %381 = vmatprep.subr.mxu0 0.0
        %382 = vmatpush2.xpose.msra.mxu0 0.0
        %383 = vmatprep.subr.mxu0 0.0
        %384 = vmatpush2.xpose.msra.mxu0 0.0
        %385 = vmatprep.subr.mxu0 0.0
        %386 = vmatpush2.xpose.msra.mxu0 0.0
        %387 = vmatprep.subr.mxu0 0.0
        %388 = vmatpush2.xpose.msra.mxu0 0.0
        %389 = vmatprep.subr.mxu0 0.0
        %390 = vmatpush2.xpose.msra.mxu0 0.0
        %391 = vmatprep.subr.mxu0 0.0
        %392 = vmatpush2.xpose.msra.mxu0 0.0
        %393 = vmatprep.mubr.f32.mxu0 0.0
        %394 = vmatmul.mubr.f32.gmra.mxu0 %v303
        %v395 = vpop.f32.mrf.mxu0
        %v396 = vadd.f32 %v299, %v395
        %v397 = vpop.f32.mrf.mxu0
        %398 = vdwg.mxu0
        %v399 = vmax.f32 %v396, 0.0
        %v400 = vld [vmem:[%s284] sm:$0xff]
        %v401 = vld [vmem:[%s284 + $0x8] sm:$0xff]
        %v402 = vld [vmem:[%s284 + $0x10] sm:$0xff]
        %v403 = vld [vmem:[%s284 + $0x18] sm:$0xff]
        %v404 = vld [vmem:[%s4] sm:$0x1]
        %v406 = vlaneseq
        %v407 = vshrl.u32 %v406, 7
        %v408 = vsub.s32 0, %v407
        %v409 = vrot.slane %v404, %v408
        %vm411 = vcmask 523264
        %v413 = vsel %vm411, %v399, 0
        %v416 = vsel %vm411, %v400, 0
        %v419 = vsel %vm411, %v401, 0
        %v422 = vsel %vm411, %v402, 0
        %v425 = vsel %vm411, %v403, 0
        %427 = vmatprep.subr.mxu0 0.0
        %428 = vmatpush1.xpose.msra.mxu0 0.0
        %429 = vmatprep.subr.mxu0 0.0
        %430 = vmatpush1.xpose.msra.mxu0 0.0
        %431 = vmatprep.subr.mxu0 0.0
        %432 = vmatpush1.xpose.msra.mxu0 0.0
        %433 = vmatprep.subr.mxu0 0.0
        %434 = vmatpush1.xpose.msra.mxu0 0.0
        %435 = vmatprep.subr.mxu0 0.0
        %436 = vmatpush1.xpose.msra.mxu0 0.0
        %437 = vmatprep.subr.mxu0 0.0
        %438 = vmatpush1.xpose.msra.mxu0 0.0
        %439 = vmatprep.subr.mxu0 0.0
        %440 = vmatpush1.xpose.msra.mxu0 0.0
        %441 = vmatprep.subr.mxu0 0.0
        %442 = vmatpush1.xpose.msra.mxu0 0.0
        %443 = vmatprep.subr.mxu0 0.0
        %444 = vmatpush1.xpose.msra.mxu0 0.0
        %445 = vmatprep.subr.mxu0 0.0
        %446 = vmatpush1.xpose.msra.mxu0 0.0
        %447 = vmatprep.subr.mxu0 0.0
        %448 = vmatpush1.xpose.msra.mxu0 0.0
        %449 = vmatprep.subr.mxu0 0.0
        %450 = vmatpush1.xpose.msra.mxu0 0.0
        %451 = vmatprep.subr.mxu0 0.0
        %452 = vmatpush1.xpose.msra.mxu0 %v425
        %453 = vmatprep.subr.mxu0 0.0
        %454 = vmatpush1.xpose.msra.mxu0 %v422
        %455 = vmatprep.subr.mxu0 0.0
        %456 = vmatpush1.xpose.msra.mxu0 %v419
        %457 = vmatprep.subr.mxu0 0.0
        %458 = vmatpush1.xpose.msra.mxu0 %v416
        %459 = vmatprep.subr.mxu0 0.0
        %460 = vmatpush2.xpose.msra.mxu0 0.0
        %461 = vmatprep.subr.mxu0 0.0
        %462 = vmatpush2.xpose.msra.mxu0 0.0
        %463 = vmatprep.subr.mxu0 0.0
        %464 = vmatpush2.xpose.msra.mxu0 0.0
        %465 = vmatprep.subr.mxu0 0.0
        %466 = vmatpush2.xpose.msra.mxu0 0.0
        %467 = vmatprep.subr.mxu0 0.0
        %468 = vmatpush2.xpose.msra.mxu0 0.0
        %469 = vmatprep.subr.mxu0 0.0
        %470 = vmatpush2.xpose.msra.mxu0 0.0
        %471 = vmatprep.subr.mxu0 0.0
        %472 = vmatpush2.xpose.msra.mxu0 0.0
        %473 = vmatprep.subr.mxu0 0.0
        %474 = vmatpush2.xpose.msra.mxu0 0.0
        %475 = vmatprep.subr.mxu0 0.0
        %476 = vmatpush2.xpose.msra.mxu0 0.0
        %477 = vmatprep.subr.mxu0 0.0
        %478 = vmatpush2.xpose.msra.mxu0 0.0
        %479 = vmatprep.subr.mxu0 0.0
        %480 = vmatpush2.xpose.msra.mxu0 0.0
        %481 = vmatprep.subr.mxu0 0.0
        %482 = vmatpush2.xpose.msra.mxu0 0.0
        %483 = vmatprep.subr.mxu0 0.0
        %484 = vmatpush2.xpose.msra.mxu0 0.0
        %485 = vmatprep.subr.mxu0 0.0
        %486 = vmatpush2.xpose.msra.mxu0 0.0
        %487 = vmatprep.subr.mxu0 0.0
        %488 = vmatpush2.xpose.msra.mxu0 0.0
        %489 = vmatprep.subr.mxu0 0.0
        %490 = vmatpush2.xpose.msra.mxu0 0.0
        %491 = vmatprep.mubr.f32.mxu0 0.0
        %492 = vmatmul.mubr.f32.gmra.mxu0 %v413
        %v493 = vpop.f32.mrf.mxu0
        %v494 = vadd.f32 %v409, %v493
        %v495 = vpop.f32.mrf.mxu0
        %496 = vdwg.mxu0
        %497 = vst.msk [vmem:[%s267] sm:$0xff] %vm301, %v494
        %s498 = sand.u32 %s164, 1
        %s499 = scalar_lea.sflag [#allocation3], %s498
        %s500 = sand.u32 %s164, 1
        %s501 = smul.addr %s500, 8
        %s502 = scalar_lea.vmem [#allocation2], %s501
        // Predicated region
        $region41: #{tpu_custom_call.1} parent=39 // pred_check
          %p503 = pneg %p174
        $region42: #{tpu_custom_call.1} parent=39 // pred_check_branch
          %505 = sbr.rel (%p503) target = $region44
        $region43: #{tpu_custom_call.1} parent=39 // pred_region
          %s507 = ssub.s32 128, 128
          %508 = vsyncadd %s499, %s507
          %s509 = smul.addr %s23, 128
          %s510 = scalar_lea.hbm %s5, %s509
          %s512 = sshll.u32 %s502, 4
          %s513 = int_to_ptr.vmem [resolvable:$true] %s512
          %515 = dma.vmem_to_hbm [thread:$0]  %s513, 128, %s510, %s499
        $region44: #{tpu_custom_call.1} parent=39 // pred_fallthru
          _
      $region40: #{tpu_custom_call.1} parent=5 // pred_fallthru
        _
      %p516 = scmp.le.s32.totalorder 2, %s14
      // Predicated region
      $region45: #{tpu_custom_call.1} parent=5 // pred_check
        %p517 = pneg %p516
      $region46: #{tpu_custom_call.1} parent=5 // pred_check_branch
        %519 = sbr.rel (%p517) target = $region48
      $region47: #{tpu_custom_call.1} parent=5 // pred_region
        %s520 = ssub.s32 %s14, 2
        // Predicated region
        $region49: #{tpu_custom_call.1} parent=47 // pred_check
          %p521 = pneg %p180
        $region50: #{tpu_custom_call.1} parent=47 // pred_check_branch
          %523 = sbr.rel (%p521) target = $region52
        $region51: #{tpu_custom_call.1} parent=47 // pred_region
          %s524 = sand.u32 %s165, 1
          %s525 = scalar_lea.sflag [#allocation3], %s524
          %s526 = sand.u32 %s165, 1
          %s527 = smul.addr %s526, 8
          %s528 = scalar_lea.vmem [#allocation2], %s527
          %529 = dma.done %s525, 128
        $region52: #{tpu_custom_call.1} parent=47 // pred_fallthru
          _
      $region48: #{tpu_custom_call.1} parent=5 // pred_fallthru
        _
    $region6: #{tpu_custom_call.1} parent=1 // loop_footer
      %s18 = sadd.s32 1, %s14
    $region7: #{tpu_custom_call.1} parent=1 // loop_footer_branch
      %13 = sbr.rel target = $region3
    $region8: #{tpu_custom_call.1} parent=1 // loop_exit
      _
    %530 = vsyncpa [#allocation3], 1
    %s531 = scalar_lea.sflag [#allocation3], 1
    %532 = vsyncpa %s531, 1

</llo_original>
